<compile_context>
chip_gen: v7x
topology: tpu7x:2x2x1
jax: 0.10.0
libtpu: 0.0.40
codegen_flags: <defaults>
</compile_context>

<pallas_src>
import functools
import math

import jax
import jax.numpy as jnp
import numpy as np
from jax.experimental import pallas as pl
from jax.experimental.pallas import tpu as pltpu

COMPUTE_DTYPE = jnp.bfloat16   # MXU operand dtype (accumulation is always f32)


# ----------------------------- tiled linear kernel ---------------------------------

def _matmul_bias_kernel(x_ref, w_ref, b_ref, o_ref, acc_ref):
    # x: (tm, tk), w: (tk, tn), b: (1, tn) f32, acc: (tm, tn) f32.
    @pl.when(pl.program_id(2) == 0)
    def _():
        acc_ref[...] = jnp.zeros_like(acc_ref)

    acc_ref[...] += jnp.dot(x_ref[...], w_ref[...], preferred_element_type=jnp.float32)

    @pl.when(pl.program_id(2) == pl.num_programs(2) - 1)
    def _():
        o_ref[...] = (acc_ref[...] + b_ref[...]).astype(o_ref.dtype)


def _pick_tile(dim, cap, align):
    """Largest tile <= cap that divides dim and respects the (8,128) rule, else full dim."""
    if dim <= cap:
        return dim
    t = cap
    while t >= align:
        if dim % t == 0:
            return t
        t //= 2
    return dim


def linear_tiled(x2d, w, b, out_dtype=jnp.float32):
    """y = x2d @ w + b.  x2d: (M, K) f32, w: (K, N) f32, b: (N,) f32."""
    M, K = x2d.shape
    _, N = w.shape
    tm = _pick_tile(M, 512, 8)
    tk = _pick_tile(K, 512, 128)
    tn = _pick_tile(N, 512, 128)
    grid = (M // tm, N // tn, K // tk)
    return pl.pallas_call(
        _matmul_bias_kernel,
        out_shape=jax.ShapeDtypeStruct((M, N), out_dtype),
        grid=grid,
        in_specs=[
            pl.BlockSpec((tm, tk), lambda i, j, k: (i, k)),
            pl.BlockSpec((tk, tn), lambda i, j, k: (k, j)),
            pl.BlockSpec((1, tn), lambda i, j, k: (0, j)),
        ],
        out_specs=pl.BlockSpec((tm, tn), lambda i, j, k: (i, j)),
        scratch_shapes=[pltpu.VMEM((tm, tn), jnp.float32)],
        compiler_params=pltpu.CompilerParams(
            dimension_semantics=("parallel", "parallel", "arbitrary")),
    )(x2d.astype(COMPUTE_DTYPE), w.astype(COMPUTE_DTYPE),
      b.reshape(1, N).astype(jnp.float32))


# ----------------------------- fused attention kernel ------------------------------

def _fused_mha_kernel(*refs, num_heads, head_dim, scale, use_mask, use_rope):
    idx = 0
    qkv_ref = refs[idx]; idx += 1
    if use_mask:
        lmc_ref, lmr_ref = refs[idx], refs[idx + 1]; idx += 2
    if use_rope:
        cos_ref, sin_ref, rot_ref = refs[idx], refs[idx + 1], refs[idx + 2]; idx += 3
    wo_ref, bo_ref, o_ref = refs[idx], refs[idx + 1], refs[idx + 2]

    D = num_heads * head_dim
    qkv = qkv_ref[...]                      # (L, 3D), COMPUTE_DTYPE
    cdt = qkv.dtype
    q = qkv[:, :D]
    k = qkv[:, D:2 * D]
    v = qkv[:, 2 * D:]

    if use_rope:
        # interleaved rope: q_rot = q*cos + (q @ P)*sin ; P is a signed pair-swap matrix.
        cos = cos_ref[...]
        sin = sin_ref[...]
        P = rot_ref[...]
        q = (q.astype(jnp.float32) * cos
             + jnp.dot(q, P, preferred_element_type=jnp.float32) * sin).astype(cdt)
        k = (k.astype(jnp.float32) * cos
             + jnp.dot(k, P, preferred_element_type=jnp.float32) * sin).astype(cdt)

    if use_mask:
        # (L,1) * (1,L) -> (L,L); reference mask is lm_i * lm_j, masked where == 0.
        invalid = (lmc_ref[...] * lmr_ref[...]) == 0.0

    outs = []
    for h in range(num_heads):
        sl = slice(h * head_dim, (h + 1) * head_dim)
        qh, kh, vh = q[:, sl], k[:, sl], v[:, sl]
        s = jax.lax.dot_general(qh, kh, (((1,), (1,)), ((), ())),
                                preferred_element_type=jnp.float32) * scale
        if use_mask:
            s = jnp.where(invalid, -1.0e9, s)         # masked_fill(mask == 0, -1e9)
        s = s - jnp.max(s, axis=-1, keepdims=True)
        p = jnp.exp(s)
        p = p * pl.reciprocal(jnp.sum(p, axis=-1, keepdims=True), approx=True)
        outs.append(jnp.dot(p.astype(cdt), vh, preferred_element_type=jnp.float32))

    ctx = jnp.concatenate(outs, axis=-1).astype(cdt)   # (L, D), lane-dense
    y = jnp.dot(ctx, wo_ref[...], preferred_element_type=jnp.float32) + bo_ref[...]
    o_ref[...] = y.astype(o_ref.dtype)


def fused_attention(qkv, wo, bo, *, num_heads, length_mask=None, rope=None,
                    out_dtype=jnp.float32):
    """qkv: (B, L, 3D); returns (B, L, D) = w_o(attention(q, k, v, mask))."""
    B, L, threeD = qkv.shape
    D = threeD // 3
    Dh = D // num_heads
    use_mask = length_mask is not None
    use_rope = rope is not None

    args = [qkv]
    in_specs = [pl.BlockSpec((pl.Squeezed(), L, threeD), lambda b: (b, 0, 0))]
    if use_mask:
        lm = length_mask.astype(jnp.float32)
        args += [lm.reshape(B, L, 1), lm.reshape(B, 1, L)]
        in_specs += [pl.BlockSpec((pl.Squeezed(), L, 1), lambda b: (b, 0, 0)),
                     pl.BlockSpec((pl.Squeezed(), 1, L), lambda b: (b, 0, 0))]
    if use_rope:
        cos_tab, sin_tab, P = rope
        args += [cos_tab.astype(jnp.float32), sin_tab.astype(jnp.float32),
                 P.astype(COMPUTE_DTYPE)]
        in_specs += [pl.BlockSpec((L, D), lambda b: (0, 0)),
                     pl.BlockSpec((L, D), lambda b: (0, 0)),
                     pl.BlockSpec((D, D), lambda b: (0, 0))]
    args += [wo.astype(COMPUTE_DTYPE), bo.reshape(1, D).astype(jnp.float32)]
    in_specs += [pl.BlockSpec((D, D), lambda b: (0, 0)),
                 pl.BlockSpec((1, D), lambda b: (0, 0))]

    kernel = functools.partial(_fused_mha_kernel, num_heads=num_heads, head_dim=Dh,
                               scale=1.0 / math.sqrt(Dh),
                               use_mask=use_mask, use_rope=use_rope)
    return pl.pallas_call(
        kernel,
        out_shape=jax.ShapeDtypeStruct((B, L, D), out_dtype),
        grid=(B,),
        in_specs=in_specs,
        out_specs=pl.BlockSpec((pl.Squeezed(), L, D), lambda b: (b, 0, 0)),
        compiler_params=pltpu.CompilerParams(dimension_semantics=("parallel",)),
    )(*args)


# ----------------------------- rotary tables (host-side, constants) ----------------

def make_rope_tables(L, num_heads, head_dim, rot_dim):
    """cos/sin tables (L, D) tiled per head + signed pair-swap matrix P (D, D)."""
    if rot_dim == 0:
        return None
    assert rot_dim % 2 == 0 and rot_dim <= head_dim
    D = num_heads * head_dim
    inv_freq = 1.0 / (10000.0 ** (jnp.arange(0, rot_dim, 2, dtype=jnp.float32) / rot_dim))
    pos = jnp.arange(L, dtype=jnp.float32)
    freqs = jnp.repeat(pos[:, None] * inv_freq[None, :], 2, axis=-1)      # (L, rot_dim)
    cos_h = jnp.concatenate([jnp.cos(freqs),
                             jnp.ones((L, head_dim - rot_dim), jnp.float32)], -1)
    sin_h = jnp.concatenate([jnp.sin(freqs),
                             jnp.zeros((L, head_dim - rot_dim), jnp.float32)], -1)
    cos_tab = jnp.tile(cos_h, (1, num_heads))                             # (L, D)
    sin_tab = jnp.tile(sin_h, (1, num_heads))
    P = np.zeros((D, D), np.float32)
    for h in range(num_heads):
        base = h * head_dim
        for i in range(rot_dim // 2):
            P[base + 2 * i + 1, base + 2 * i] = -1.0   # r[2i]   = -x[2i+1]
            P[base + 2 * i, base + 2 * i + 1] = 1.0    # r[2i+1] = +x[2i]
    return cos_tab, sin_tab, jnp.asarray(P)


# ----------------------------- MultiHeadAttention forward --------------------------

def multi_head_attention(params, q, k, v, mask=None, *, num_heads, rope=None):
    """Pallas forward of MultiHeadAttention.forward(q, k, v, mask).

    `mask` is the (B, L) {0,1} length mask; the reference's (B, 1, L, L) mask
    (outer product of the length mask with itself) is rebuilt inside the kernel.
    """
    B, L, D = q.shape
    assert D % num_heads == 0
    if (q is k) and (k is v):   # self-attention: single fused (D, 3D) QKV matmul
        w_qkv = jnp.concatenate([params["wq"], params["wk"], params["wv"]], axis=1)
        b_qkv = jnp.concatenate([params["bq"], params["bk"], params["bv"]], axis=0)
        qkv = linear_tiled(q.reshape(B * L, D), w_qkv, b_qkv, out_dtype=COMPUTE_DTYPE)
    else:                       # cross-attention: three tiled projections
        qkv = jnp.concatenate(
            [linear_tiled(q.reshape(B * L, D), params["wq"], params["bq"], COMPUTE_DTYPE),
             linear_tiled(k.reshape(B * L, D), params["wk"], params["bk"], COMPUTE_DTYPE),
             linear_tiled(v.reshape(B * L, D), params["wv"], params["bv"], COMPUTE_DTYPE)],
            axis=-1)
    qkv = qkv.reshape(B, L, 3 * D)
    return fused_attention(qkv, params["wo"], params["bo"], num_heads=num_heads,
                           length_mask=mask, rope=rope)


def init_params(key, dim):
    def dense(k, fan_in, fan_out):
        kw, kb = jax.random.split(k)
        return (jax.random.normal(kw, (fan_in, fan_out), jnp.float32) * 0.05,
                jax.random.normal(kb, (fan_out,), jnp.float32) * 0.01)
    ks = jax.random.split(key, 4)
    p = {}
    p["wq"], p["bq"] = dense(ks[0], dim, dim)
    p["wk"], p["bk"] = dense(ks[1], dim, dim)
    p["wv"], p["bv"] = dense(ks[2], dim, dim)
    p["wo"], p["bo"] = dense(ks[3], dim, dim)
    return p


# ----------------------------- pure-JAX reference (for self-check) -----------------

def _apply_rotary_ref(t, rot_dim):
    L = t.shape[2]
    inv_freq = 1.0 / (10000.0 ** (jnp.arange(0, rot_dim, 2, dtype=jnp.float32) / rot_dim))
    pos = jnp.arange(L, dtype=jnp.float32)
    freqs = jnp.repeat(pos[:, None] * inv_freq[None, :], 2, axis=-1)
    cos, sin = jnp.cos(freqs), jnp.sin(freqs)
    t_rot, t_pass = t[..., :rot_dim], t[..., rot_dim:]
    x1, x2 = t_rot[..., 0::2], t_rot[..., 1::2]
    rotated = jnp.stack([-x2, x1], axis=-1).reshape(t_rot.shape)
    return jnp.concatenate([t_rot * cos + rotated * sin, t_pass], axis=-1)


def reference_mha(params, x, lm, num_heads, rot_dim):
    B, L, D = x.shape
    Dh = D // num_heads
    q = x @ params["wq"] + params["bq"]
    k = x @ params["wk"] + params["bk"]
    v = x @ params["wv"] + params["bv"]
    q = q.reshape(B, L, num_heads, Dh).transpose(0, 2, 1, 3)
    k = k.reshape(B, L, num_heads, Dh).transpose(0, 2, 1, 3)
    v = v.reshape(B, L, num_heads, Dh).transpose(0, 2, 1, 3)
    if rot_dim:
        q = _apply_rotary_ref(q, rot_dim)
        k = _apply_rotary_ref(k, rot_dim)
    s = jnp.einsum("bhqd,bhkd->bhqk", q, k) / math.sqrt(Dh)
    mask = lm[:, None, None, :] * lm[:, None, :, None]
    s = jnp.where(mask == 0, -1.0e9, s)
    p = jax.nn.softmax(s, axis=-1)
    o = jnp.einsum("bhqk,bhkd->bhqd", p, v).transpose(0, 2, 1, 3).reshape(B, L, D)
    return o @ params["wo"] + params["bo"]


# ----------------------------- demo -------------------------------------------------

if __name__ == "__main__":
    B, L, dim, num_heads = 2, 8, 32, 4
    Dh = dim // num_heads
    rot_dim = Dh // 2        # matches RotaryEmbedding(dim=int(dim / (num_heads * 2)))

    key = jax.random.PRNGKey(0)
    kp, kx = jax.random.split(key)
    params = init_params(kp, dim)
    x = jax.random.normal(kx, (B, L, dim), jnp.float32)
    length_mask = jnp.array([[1, 1, 1, 1, 1, 1, 1, 1],
                             [1, 1, 1, 1, 1, 0, 0, 0]], jnp.float32)
    rope = make_rope_tables(L, num_heads, Dh, rot_dim)

    out = multi_head_attention(params, x, x, x, mask=length_mask,
                               num_heads=num_heads, rope=rope)
    out = jax.block_until_ready(out)
    assert out.shape == (B, L, dim)

    ref = reference_mha(params, x, length_mask, num_heads, rot_dim)
    err = float(jnp.max(jnp.abs(out - ref)))
    assert err < 3e-2, f"max abs error vs reference: {err}"
    print("KERNEL_OK")
</pallas_src>

<mosaic_0001>
module attributes {stable_mosaic.version = 11 : i64} {
  func.func @_matmul_bias_kernel(%arg0: i32, %arg1: i32, %arg2: i32, %arg3: memref<16x32xbf16, #tpu.memory_space<vmem>>, %arg4: memref<32x96xbf16, #tpu.memory_space<vmem>>, %arg5: memref<1x96xf32, #tpu.memory_space<vmem>>, %arg6: memref<16x96xbf16, #tpu.memory_space<vmem>>, %arg7: memref<16x96xf32, #tpu.memory_space<vmem>>) attributes {dimension_semantics = [#tpu.dimension_semantics<parallel>, #tpu.dimension_semantics<parallel>, #tpu.dimension_semantics<arbitrary>], iteration_bounds = array<i64: 1, 1, 1>, scalar_prefetch = 0 : i64, scratch_operands = 1 : i64, tpu.core_type = #tpu.core_type<tc>, window_params = [{transform_indices = @transform_0, window_bounds = array<i64: 16, 32>}, {transform_indices = @transform_1, window_bounds = array<i64: 32, 96>}, {transform_indices = @transform_2, window_bounds = array<i64: 1, 96>}, {transform_indices = @transform_3, window_bounds = array<i64: 16, 96>}]} {
    %c0_i32 = arith.constant 0 : i32
    %0 = arith.cmpi eq, %arg2, %c0_i32 : i32
    %1 = arith.extui %0 : i1 to i32
    %c0_i32_0 = arith.constant 0 : i32
    %2 = arith.cmpi ne, %1, %c0_i32_0 : i32
    scf.if %2 {
      %cst_10 = arith.constant 0.000000e+00 : f32
      %12 = vector.broadcast %cst_10 : f32 to vector<16x96xf32>
      %c0_11 = arith.constant 0 : index
      %c0_12 = arith.constant 0 : index
      %13 = vector.load %arg7[%c0_11, %c0_12] : memref<16x96xf32, #tpu.memory_space<vmem>>, vector<16x96xf32>
      tpu.vector_store %arg7[%c0_11, %c0_12], %12 {strides = array<i32>} : memref<16x96xf32, #tpu.memory_space<vmem>>, vector<16x96xf32>,
    } else {
    }
    %c0 = arith.constant 0 : index
    %c0_1 = arith.constant 0 : index
    %3 = vector.load %arg7[%c0, %c0_1] : memref<16x96xf32, #tpu.memory_space<vmem>>, vector<16x96xf32>
    %c0_2 = arith.constant 0 : index
    %c0_3 = arith.constant 0 : index
    %4 = vector.load %arg3[%c0_2, %c0_3] : memref<16x32xbf16, #tpu.memory_space<vmem>>, vector<16x32xbf16>
    %c0_4 = arith.constant 0 : index
    %c0_5 = arith.constant 0 : index
    %5 = vector.load %arg4[%c0_4, %c0_5] : memref<32x96xbf16, #tpu.memory_space<vmem>>, vector<32x96xbf16>
    %cst = arith.constant dense<0.000000e+00> : vector<16x96xf32>
    %6 = tpu.matmul %4, %5, %cst {dimension_numbers = #tpu.dot_dimension_numbers<[1], [0], [0], [1], [0, 0, 1, 1], [], []>} : vector<16x32xbf16>, vector<32x96xbf16>, vector<16x96xf32> -> vector<16x96xf32>
    %7 = arith.addf %3, %6 : vector<16x96xf32>
    %c0_6 = arith.constant 0 : index
    %c0_7 = arith.constant 0 : index
    %8 = vector.load %arg7[%c0_6, %c0_7] : memref<16x96xf32, #tpu.memory_space<vmem>>, vector<16x96xf32>
    tpu.vector_store %arg7[%c0_6, %c0_7], %7 {strides = array<i32>} : memref<16x96xf32, #tpu.memory_space<vmem>>, vector<16x96xf32>,
    %c0_i32_8 = arith.constant 0 : i32
    %9 = arith.cmpi eq, %arg2, %c0_i32_8 : i32
    %10 = arith.extui %9 : i1 to i32
    %c0_i32_9 = arith.constant 0 : i32
    %11 = arith.cmpi ne, %10, %c0_i32_9 : i32
    scf.if %11 {
      %c0_10 = arith.constant 0 : index
      %c0_11 = arith.constant 0 : index
      %12 = vector.load %arg7[%c0_10, %c0_11] : memref<16x96xf32, #tpu.memory_space<vmem>>, vector<16x96xf32>
      %c0_12 = arith.constant 0 : index
      %c0_13 = arith.constant 0 : index
      %13 = vector.load %arg5[%c0_12, %c0_13] : memref<1x96xf32, #tpu.memory_space<vmem>>, vector<1x96xf32>
      %14 = vector.broadcast %13 : vector<1x96xf32> to vector<16x96xf32>
      %15 = arith.addf %12, %14 : vector<16x96xf32>
      %16 = arith.truncf %15 : vector<16x96xf32> to vector<16x96xbf16>
      %c0_14 = arith.constant 0 : index
      %c0_15 = arith.constant 0 : index
      %17 = vector.load %arg6[%c0_14, %c0_15] : memref<16x96xbf16, #tpu.memory_space<vmem>>, vector<16x96xbf16>
      tpu.vector_store %arg6[%c0_14, %c0_15], %16 {strides = array<i32>} : memref<16x96xbf16, #tpu.memory_space<vmem>>, vector<16x96xbf16>,
    } else {
    }
    return
  }
  func.func @transform_0(%arg0: i32, %arg1: i32, %arg2: i32) -> (i32, i32) {
    %c0_i32 = arith.constant 0 : i32
    return %arg0, %arg2 : i32, i32
  }
  func.func @transform_1(%arg0: i32, %arg1: i32, %arg2: i32) -> (i32, i32) {
    %c0_i32 = arith.constant 0 : i32
    return %arg2, %arg1 : i32, i32
  }
  func.func @transform_2(%arg0: i32, %arg1: i32, %arg2: i32) -> (i32, i32) {
    %c0_i32 = arith.constant 0 : i32
    %c0_i32_0 = arith.constant 0 : i32
    return %c0_i32, %arg1 : i32, i32
  }
  func.func @transform_3(%arg0: i32, %arg1: i32, %arg2: i32) -> (i32, i32) {
    %c0_i32 = arith.constant 0 : i32
    return %arg0, %arg1 : i32, i32
  }
}

</mosaic_0001>

<llo_original>
// kernel: tpu_custom_call.1
$region0: #{tpu_custom_call.1}
  #allocation0 [shape = 'u32[]', space=smem, size = 0x4, offset = 0x4, fixed_abs, tag = 'smem constant byte address 0x4 - core index']
  #allocation1 [shape = 'u32[144,128]{1,0:T(1,128)}', space=vmem, size = 0x12000, scoped, tag = 'internal scratch']
  #allocation2 [shape = 'f32[16,96]{1,0:T(8,128)}', space=vmem, size = 0x2000, scoped, tag = 'scratch operand']
  %s0 = inlined_call_operand.hbm [shape: bf16[16,32], index: 0, kind: input, shape index: {}]
  %s1 = inlined_call_operand.hbm [shape: bf16[32,96], index: 1, kind: input, shape index: {}]
  %s2 = inlined_call_operand.vmem [shape: f32[1,96], index: 2, kind: input, shape index: {}]
  %s3 = inlined_call_operand.hbm [shape: bf16[16,96], index: 3, kind: output, shape index: {}]
  %s4 = sld [smem:[#allocation0]]
  $region38: #{tpu_custom_call.1} parent=0
    _
  %s6 = ssub.s32 1, %s4
  %s7 = scalar_select 0, %s6, %s4
  $region1: #{tpu_custom_call.1} parent=0
    #allocation3 [shape = 'u8[4096]{0}', space=vmem, size = 0x1000, scoped, tag = 'input window, operand 0, single buffered']
    #allocation4 [shape = 's32[1]{0}', space=sflag, size = 0x4, scoped, tag = 'scoped memory for tpu_custom_call.1']
    #allocation5 [shape = 's32[1]{0}', space=sflag, size = 0x4, scoped, tag = 'scoped memory for tpu_custom_call.1']
    #allocation6 [shape = 'u8[8192]{0}', space=vmem, size = 0x2000, scoped, tag = 'input window, operand 1, single buffered']
    #allocation7 [shape = 's32[1]{0}', space=sflag, size = 0x4, scoped, tag = 'scoped memory for tpu_custom_call.1']
    #allocation8 [shape = 'u8[4096]{0}', space=vmem, size = 0x1000, scoped, tag = 'output window, operand 0, single buffered']
    %8 = vsyncpa [#allocation4], 0
    %9 = vsyncpa [#allocation7], 0
    %10 = vsyncpa [#allocation5], 0
    // Predicated region
    $region2: #{tpu_custom_call.1} parent=1 // pred_check
      _
    $region3: #{tpu_custom_call.1} parent=1 // pred_check_branch
      %12 = sbr.rel (0) target = $region5
    $region4: #{tpu_custom_call.1} parent=1 // pred_region
      %s14 = ssub.s32 128, 128
      %15 = vsyncadd [#allocation4], %s14
      %s16 = sshll.u32 [#allocation3], 4
      %s17 = int_to_ptr.vmem [resolvable:$true] %s16
      %22 = dma.hbm_to_vmem [thread:$0]  %s0, 128, %s17, [#allocation4], 64, 64, 4
    $region5: #{tpu_custom_call.1} parent=1 // pred_fallthru
      _
    // Predicated region
    $region6: #{tpu_custom_call.1} parent=1 // pred_check
      _
    $region7: #{tpu_custom_call.1} parent=1 // pred_check_branch
      %24 = sbr.rel (0) target = $region9
    $region8: #{tpu_custom_call.1} parent=1 // pred_region
      %s26 = ssub.s32 256, 256
      %27 = vsyncadd [#allocation7], %s26
      %s28 = sshll.u32 [#allocation6], 4
      %s29 = int_to_ptr.vmem [resolvable:$true] %s28
      %34 = dma.hbm_to_vmem [thread:$0]  %s1, 256, %s29, [#allocation7], 64, 64, 4
    $region9: #{tpu_custom_call.1} parent=1 // pred_fallthru
      _
    // Predicated region
    $region10: #{tpu_custom_call.1} parent=1 // pred_check
      _
    $region11: #{tpu_custom_call.1} parent=1 // pred_check_branch
      %36 = sbr.rel (0) target = $region13
    $region12: #{tpu_custom_call.1} parent=1 // pred_region
      _
    $region13: #{tpu_custom_call.1} parent=1 // pred_fallthru
      _
    // Predicated region
    $region14: #{tpu_custom_call.1} parent=1 // pred_check
      _
    $region15: #{tpu_custom_call.1} parent=1 // pred_check_branch
      %38 = sbr.rel (0) target = $region17
    $region16: #{tpu_custom_call.1} parent=1 // pred_region
      %39 = dma.done [#allocation4], 128
    $region17: #{tpu_custom_call.1} parent=1 // pred_fallthru
      _
    // Predicated region
    $region18: #{tpu_custom_call.1} parent=1 // pred_check
      _
    $region19: #{tpu_custom_call.1} parent=1 // pred_check_branch
      %41 = sbr.rel (0) target = $region21
    $region20: #{tpu_custom_call.1} parent=1 // pred_region
      %42 = dma.done [#allocation7], 256
    $region21: #{tpu_custom_call.1} parent=1 // pred_fallthru
      _
    %p44 = scmp.eq.s32.totalorder 0, 0
    // Predicated region
    $region22: #{tpu_custom_call.1} parent=1 // pred_check
      %p45 = pneg %p44
    $region23: #{tpu_custom_call.1} parent=1 // pred_check_branch
      %47 = sbr.rel (%p45) target = $region25
    $region24: #{tpu_custom_call.1} parent=1 // pred_region
      %vm48 = vcmask 785408
      %49 = vst.msk [vmem:[#allocation2] sm:$0xff] %vm48, 0.0
      %50 = vst.msk [vmem:[#allocation2 + $0x8] sm:$0xff] %vm48, 0.0
    $region25: #{tpu_custom_call.1} parent=1 // pred_fallthru
      _
    %v51 = vld [vmem:[#allocation2] sm:$0xff]
    %v52 = vld [vmem:[#allocation2 + $0x8] sm:$0xff]
    %v53 = vld [vmem:[#allocation3] sm:$0xf]
    %v54 = vld [vmem:[#allocation3 + $0x4] sm:$0xf]
    %v55 = vld [vmem:[#allocation6] sm:$0xf]
    %v56 = vld [vmem:[#allocation6 + $0x4] sm:$0xf]
    %v57 = vld [vmem:[#allocation6 + $0x8] sm:$0xf]
    %v58 = vld [vmem:[#allocation6 + $0xc] sm:$0xf]
    %v61 = vunpack.c.l.b16 %v53
    %v62 = vunpack.c.l.b16 %v54
    %v63 = vpack.c.b16 %v62, %v61
    %v68 = vunpack.c.l.b16 %v55
    %v69 = vunpack.c.l.b16 %v56
    %v70 = vunpack.c.l.b16 %v57
    %v71 = vunpack.c.l.b16 %v58
    %v72 = vpack.c.b16 %v69, %v68
    %v73 = vpack.c.b16 %v71, %v70
    %vm76 = vcmask 261120
    %v78 = vsel %vm76, %v63, 0
    %80 = vmatprep.subr.bf16.mxu0 0
    %81 = vmatpush1.bf16.msra.mxu0 %v72
    %82 = vmatprep.subr.bf16.mxu0 0
    %83 = vmatpush1.bf16.msra.mxu0 %v73
    %84 = vmatprep.subr.bf16.mxu0 0
    %85 = vmatpush1.bf16.msra.mxu0 0
    %86 = vmatprep.subr.bf16.mxu0 0
    %87 = vmatpush1.bf16.msra.mxu0 0
    %88 = vmatprep.subr.bf16.mxu0 0
    %89 = vmatpush1.bf16.msra.mxu0 0
    %90 = vmatprep.subr.bf16.mxu0 0
    %91 = vmatpush1.bf16.msra.mxu0 0
    %92 = vmatprep.subr.bf16.mxu0 0
    %93 = vmatpush1.bf16.msra.mxu0 0
    %94 = vmatprep.subr.bf16.mxu0 0
    %95 = vmatpush1.bf16.msra.mxu0 0
    %96 = vmatprep.subr.bf16.mxu0 0
    %97 = vmatpush1.bf16.msra.mxu0 0
    %98 = vmatprep.subr.bf16.mxu0 0
    %99 = vmatpush1.bf16.msra.mxu0 0
    %100 = vmatprep.subr.bf16.mxu0 0
    %101 = vmatpush1.bf16.msra.mxu0 0
    %102 = vmatprep.subr.bf16.mxu0 0
    %103 = vmatpush1.bf16.msra.mxu0 0
    %104 = vmatprep.subr.bf16.mxu0 0
    %105 = vmatpush1.bf16.msra.mxu0 0
    %106 = vmatprep.subr.bf16.mxu0 0
    %107 = vmatpush1.bf16.msra.mxu0 0
    %108 = vmatprep.subr.bf16.mxu0 0
    %109 = vmatpush1.bf16.msra.mxu0 0
    %110 = vmatprep.subr.bf16.mxu0 0
    %111 = vmatpush1.bf16.msra.mxu0 0
    %112 = vmatprep.mubr.bf16.mxu0 0
    %113 = vmatmul.mubr.bf16.gmra.mrb[0].mxu0 %v78
    %v114 = vpop.f32.mrb[0].mxu0
    %v115 = vadd.f32 0.0, %v114
    %v116 = vpop.f32.mrb[0].mxu0
    %v117 = vpop.f32.mrb[0].mxu0
    %v118 = vadd.f32 0.0, %v117
    %v119 = vpop.f32.mrb[0].mxu0
    %120 = vdwg.mxu0
    %v121 = vadd.f32 %v51, %v115
    %v122 = vadd.f32 %v52, %v118
    %vm123 = vcmask 785408
    %124 = vst.msk [vmem:[#allocation2] sm:$0xff] %vm123, %v121
    %125 = vst.msk [vmem:[#allocation2 + $0x8] sm:$0xff] %vm123, %v122
    // Predicated region
    $region26: #{tpu_custom_call.1} parent=1 // pred_check
      %p126 = pneg %p44
    $region27: #{tpu_custom_call.1} parent=1 // pred_check_branch
      %128 = sbr.rel (%p126) target = $region29
    $region28: #{tpu_custom_call.1} parent=1 // pred_region
      %v129 = vld [vmem:[#allocation2] sm:$0xff]
      %v130 = vld [vmem:[#allocation2 + $0x8] sm:$0xff]
      %v131 = vld [vmem:[%s2] sm:$0x1]
      %v133 = vlaneseq
      %v134 = vshrl.u32 %v133, 7
      %v135 = vsub.s32 0, %v134
      %v136 = vrot.slane %v131, %v135
      %v138 = vadd.f32 %v129, %v136
      %v139 = vadd.f32 %v130, %v136
      %v140 = vpack.c.bf16 %v139, %v138
      %v142 = vunpack.c.l.b16 %v140
      %v143 = vunpack.c.h.b16 %v140
      %v144 = vpack.c.b16 %v142, %v142
      %v145 = vpack.c.b16 %v143, %v143
      %vm148 = vcmask 781312
      %149 = vst.msk [vmem:[#allocation8] sm:$0xf] %vm148, %v144
      %150 = vst.msk [vmem:[#allocation8 + $0x4] sm:$0xf] %vm148, %v145
    $region29: #{tpu_custom_call.1} parent=1 // pred_fallthru
      _
    // Predicated region
    $region30: #{tpu_custom_call.1} parent=1 // pred_check
      _
    $region31: #{tpu_custom_call.1} parent=1 // pred_check_branch
      %152 = sbr.rel (0) target = $region33
    $region32: #{tpu_custom_call.1} parent=1 // pred_region
      %s154 = ssub.s32 128, 128
      %155 = vsyncadd [#allocation5], %s154
      %s156 = sshll.u32 [#allocation8], 4
      %s157 = int_to_ptr.vmem [resolvable:$true] %s156
      %162 = dma.vmem_to_hbm [thread:$0]  %s157, 128, %s3, [#allocation5], 64, 64, 4
    $region33: #{tpu_custom_call.1} parent=1 // pred_fallthru
      _
    // Predicated region
    $region34: #{tpu_custom_call.1} parent=1 // pred_check
      _
    $region35: #{tpu_custom_call.1} parent=1 // pred_check_branch
      %164 = sbr.rel (0) target = $region37
    $region36: #{tpu_custom_call.1} parent=1 // pred_region
      %165 = dma.done [#allocation5], 128
    $region37: #{tpu_custom_call.1} parent=1 // pred_fallthru
      _
    %166 = vsyncpa [#allocation4], 1
    %167 = vsyncpa [#allocation7], 1
    %168 = vsyncpa [#allocation5], 1

</llo_original>
